<compile_context>
chip_gen: v5e
topology: v5e:2x2
jax: 0.10.0
libtpu: 0.0.40
codegen_flags: <defaults>
</compile_context>

<pallas_src>
import functools
import math

import jax
import jax.numpy as jnp
from jax.experimental import pallas as pl
from jax.experimental.pallas import tpu as pltpu

NUM_HEADS = 4                      # MultiScaleBlock(d_model, d_model, 4, shape)
ACT = jnp.bfloat16                 # activation storage dtype (MXU-native)


def _round_up(x, m):
    return (x + m - 1) // m * m


def _vmem_limit_bytes():
    cap = 128 * 1024 * 1024
    try:
        c = pltpu.get_tpu_info().vmem_capacity_bytes
        if isinstance(c, (int, float)) and c > 0:
            cap = int(c)
    except Exception:
        pass
    return int(min(cap * 3 // 4, 100 * 1024 * 1024))


VMEM_LIMIT = _vmem_limit_bytes()


def _cparams(*sem):
    return pltpu.CompilerParams(dimension_semantics=sem,
                                vmem_limit_bytes=VMEM_LIMIT)


# ---------------------------------------------------------------------------
# Exact GELU (erf via Abramowitz&Stegun 7.1.26 polynomial, |err| < 2e-7 in f32)
# ---------------------------------------------------------------------------
def _erf_f32(x):
    a1, a2, a3, a4, a5 = (0.254829592, -0.284496736, 1.421413741,
                          -1.453152027, 1.061405429)
    p = 0.3275911
    z = jnp.abs(x)
    t = 1.0 / (1.0 + p * z)
    poly = ((((a5 * t + a4) * t + a3) * t + a2) * t + a1) * t
    r = 1.0 - poly * jnp.exp(-z * z)
    return jnp.where(x < 0, -r, r)


def _gelu_exact(x):
    return 0.5 * x * (1.0 + _erf_f32(x * 0.7071067811865476))


# ---------------------------------------------------------------------------
# MXU matmul, K fully resident (single K step), fused bias / activation / residual
# ---------------------------------------------------------------------------
def _matmul_kernel(*refs, has_res, activation):
    if has_res:
        a_ref, b_ref, bias_ref, res_ref, o_ref = refs
    else:
        a_ref, b_ref, bias_ref, o_ref = refs
        res_ref = None
    y = jnp.dot(a_ref[...], b_ref[...], preferred_element_type=jnp.float32)
    y = y + bias_ref[...]
    if activation == "gelu":
        y = _gelu_exact(y)
    elif activation == "relu":
        y = jnp.maximum(y, 0.0)
    if has_res:
        y = y + res_ref[...].astype(jnp.float32)
    o_ref[...] = y.astype(o_ref.dtype)


@functools.partial(jax.jit, static_argnames=("out_dtype", "activation"))
def pallas_matmul(a, b, bias=None, residual=None, *, out_dtype=ACT, activation=None):
    """(M,K) @ (K,N) + bias [+ activation] [+ residual]; bf16 operands, f32 accumulate."""
    M, K = a.shape
    _, N = b.shape
    if bias is None:
        bias = jnp.zeros((N,), jnp.float32)
    a = a.astype(jnp.bfloat16)
    b = b.astype(jnp.bfloat16)
    bias = bias.astype(jnp.float32)
    res = None if residual is None else residual.astype(jnp.bfloat16)

    n_out = N
    if N < 8:                       # tiny output head: keep the lane axis padded
        padn = 128 - N
        b = jnp.pad(b, ((0, 0), (0, padn)))
        bias = jnp.pad(bias, (0, padn))
        if res is not None:
            res = jnp.pad(res, ((0, 0), (0, padn)))
        N = 128

    tm = M if M <= 512 else 512
    tn = N if N <= 256 else 256
    bias2 = bias.reshape(1, N)

    inputs = [a, b, bias2]
    in_specs = [
        pl.BlockSpec((tm, K), lambda i, j: (i, 0)),
        pl.BlockSpec((K, tn), lambda i, j: (0, j)),
        pl.BlockSpec((1, tn), lambda i, j: (0, j)),
    ]
    has_res = res is not None
    if has_res:
        inputs.append(res)
        in_specs.append(pl.BlockSpec((tm, tn), lambda i, j: (i, j)))

    out = pl.pallas_call(
        functools.partial(_matmul_kernel, has_res=has_res, activation=activation),
        out_shape=jax.ShapeDtypeStruct((M, N), out_dtype),
        grid=(pl.cdiv(M, tm), pl.cdiv(N, tn)),
        in_specs=in_specs,
        out_specs=pl.BlockSpec((tm, tn), lambda i, j: (i, j)),
        compiler_params=_cparams("parallel", "parallel"),
    )(*inputs)
    return out if n_out == N else out[:, :n_out]


# ---------------------------------------------------------------------------
# Row-tiled direct stride-1 conv: per-tap ref-sliced loads -> MXU dots
# ---------------------------------------------------------------------------
def _conv_s1_kernel(x_ref, w_ref, o_ref, *, kh, kw, wpad, wout, tr):
    t = pl.program_id(1)
    rows = tr * wpad
    base = t * rows
    cout = o_ref.shape[3]
    acc = jnp.zeros((rows, cout), jnp.float32)
    for dy in range(kh):
        for dx in range(kw):
            patch = x_ref[0, pl.ds(base + dy * wpad + dx, rows), :]
            acc = acc + jnp.dot(patch, w_ref[dy * kw + dx],
                                preferred_element_type=jnp.float32)
    acc = acc.astype(o_ref.dtype)
    for r in range(tr):             # strip the padded-width garbage columns in VMEM
        o_ref[0, r] = acc[r * wpad:r * wpad + wout, :]


def _pick_row_tile(H, Wp):
    cands = [d for d in range(1, H + 1) if H % d == 0 and d * Wp <= 2048]
    multi = [d for d in cands if H // d >= 2]
    pool = multi or cands or [1]
    return max(pool)


@jax.jit
def pallas_conv_s1(x, w):
    """Direct NHWC conv, stride 1, 'same' padding (odd square kernel).
    Rows are kept flat in a width-padded (multiple of 8) layout so every tap is one
    contiguous, ref-sliced 2D load feeding an MXU dot; output is (B, H, W, Cout)."""
    B, H, W, Cin = x.shape
    kh, kw, _, Cout = w.shape
    ph, pw = kh // 2, kw // 2
    Wp = _round_up(W + 2 * pw, 8)
    tr = _pick_row_tile(H, Wp)
    x_p = jnp.pad(x.astype(jnp.bfloat16),
                  ((0, 0), (ph, ph + 1), (pw, Wp - W - pw), (0, 0)))
    R_in = (H + 2 * ph + 1) * Wp
    x_f = x_p.reshape(B, R_in, Cin)
    w_f = w.reshape(kh * kw, Cin, Cout).astype(jnp.bfloat16)
    return pl.pallas_call(
        functools.partial(_conv_s1_kernel, kh=kh, kw=kw, wpad=Wp, wout=W, tr=tr),
        out_shape=jax.ShapeDtypeStruct((B, H, W, Cout), ACT),
        grid=(B, H // tr),
        in_specs=[
            pl.BlockSpec((1, R_in, Cin), lambda b, t: (b, 0, 0)),
            pl.BlockSpec((kh * kw, Cin, Cout), lambda b, t: (0, 0, 0)),
        ],
        out_specs=pl.BlockSpec((1, tr, W, Cout), lambda b, t: (b, t, 0, 0)),
        compiler_params=_cparams("parallel", "parallel"),
    )(x_f, w_f)


# ---------------------------------------------------------------------------
# Elementwise kernels: LayerNorm, BatchNorm apply (+residual +ReLU), channel stats
# ---------------------------------------------------------------------------
def _layernorm_kernel(x_ref, g_ref, b_ref, o_ref, *, eps):
    x = x_ref[...].astype(jnp.float32)
    mean = jnp.mean(x, axis=-1, keepdims=True)
    var = jnp.mean(jnp.square(x - mean), axis=-1, keepdims=True)
    y = (x - mean) * jax.lax.rsqrt(var + eps) * g_ref[...] + b_ref[...]
    o_ref[...] = y.astype(o_ref.dtype)


@jax.jit
def pallas_layernorm(x, gamma, beta):
    R, C = x.shape
    tr = R if R <= 1024 else 1024
    return pl.pallas_call(
        functools.partial(_layernorm_kernel, eps=1e-5),
        out_shape=jax.ShapeDtypeStruct((R, C), ACT),
        grid=(pl.cdiv(R, tr),),
        in_specs=[
            pl.BlockSpec((tr, C), lambda i: (i, 0)),
            pl.BlockSpec((1, C), lambda i: (0, 0)),
            pl.BlockSpec((1, C), lambda i: (0, 0)),
        ],
        out_specs=pl.BlockSpec((tr, C), lambda i: (i, 0)),
        compiler_params=_cparams("parallel"),
    )(x, gamma.astype(jnp.float32).reshape(1, C),
      beta.astype(jnp.float32).reshape(1, C))


def _affine_kernel(*refs, relu, has_res):
    if has_res:
        x_ref, s_ref, b_ref, r_ref, o_ref = refs
    else:
        x_ref, s_ref, b_ref, o_ref = refs
        r_ref = None
    y = x_ref[...].astype(jnp.float32) * s_ref[...] + b_ref[...]
    if has_res:
        y = y + r_ref[...].astype(jnp.float32)
    if relu:
        y = jnp.maximum(y, 0.0)
    o_ref[...] = y.astype(o_ref.dtype)


@functools.partial(jax.jit, static_argnames=("relu",))
def pallas_affine(x, scale, shift, residual=None, *, relu=False):
    """y = relu?(x*scale + shift [+ residual]); the BatchNorm apply pass."""
    R, C = x.shape
    tr = R if R <= 1024 else 1024
    inputs = [x, scale.astype(jnp.float32).reshape(1, C),
              shift.astype(jnp.float32).reshape(1, C)]
    in_specs = [
        pl.BlockSpec((tr, C), lambda i: (i, 0)),
        pl.BlockSpec((1, C), lambda i: (0, 0)),
        pl.BlockSpec((1, C), lambda i: (0, 0)),
    ]
    has_res = residual is not None
    if has_res:
        inputs.append(residual)
        in_specs.append(pl.BlockSpec((tr, C), lambda i: (i, 0)))
    return pl.pallas_call(
        functools.partial(_affine_kernel, relu=relu, has_res=has_res),
        out_shape=jax.ShapeDtypeStruct((R, C), ACT),
        grid=(pl.cdiv(R, tr),),
        in_specs=in_specs,
        out_specs=pl.BlockSpec((tr, C), lambda i: (i, 0)),
        compiler_params=_cparams("parallel"),
    )(*inputs)


def _stats_kernel(x_ref, sum_ref, ssq_ref, *, nrows, tr):
    i = pl.program_id(0)

    @pl.when(i == 0)
    def _():
        sum_ref[...] = jnp.zeros_like(sum_ref)
        ssq_ref[...] = jnp.zeros_like(ssq_ref)

    x = x_ref[...].astype(jnp.float32)
    row = i * tr + jax.lax.broadcasted_iota(jnp.int32, x.shape, 0)
    x = jnp.where(row < nrows, x, 0.0)
    sum_ref[...] += jnp.sum(x, axis=0, keepdims=True)
    ssq_ref[...] += jnp.sum(x * x, axis=0, keepdims=True)


@jax.jit
def pallas_channel_stats(x):
    """One bf16 read pass -> per-channel (sum, sum of squares) in f32."""
    R, C = x.shape
    tr = R if R <= 2048 else 2048
    s, ss = pl.pallas_call(
        functools.partial(_stats_kernel, nrows=R, tr=tr),
        out_shape=(jax.ShapeDtypeStruct((1, C), jnp.float32),
                   jax.ShapeDtypeStruct((1, C), jnp.float32)),
        grid=(pl.cdiv(R, tr),),
        in_specs=[pl.BlockSpec((tr, C), lambda i: (i, 0))],
        out_specs=(pl.BlockSpec((1, C), lambda i: (0, 0)),
                   pl.BlockSpec((1, C), lambda i: (0, 0))),
        compiler_params=_cparams("arbitrary"),
    )(x)
    return s[0], ss[0]


# ---------------------------------------------------------------------------
# Fused attention_pool (depthwise 3x3, all heads) + per-head LayerNorm
# ---------------------------------------------------------------------------
def _pool_norm_kernel(x_ref, w_ref, p_ref, g_ref, b_ref, o_ref, *, wpad, wout, eps):
    hrows = o_ref.shape[1]
    dim = o_ref.shape[3]
    rows = hrows * wpad
    acc = jnp.zeros((rows, dim), jnp.float32)
    for dy in range(3):
        for dx in range(3):
            acc = acc + (x_ref[0, pl.ds(dy * wpad + dx, rows), :].astype(jnp.float32)
                         * w_ref[dy * 3 + dx])
    # grouped (per-head) LayerNorm via a block-diagonal averaging matmul (no concat)
    mean = jnp.dot(acc, p_ref[...], preferred_element_type=jnp.float32)
    xc = acc - mean
    var = jnp.dot(xc * xc, p_ref[...], preferred_element_type=jnp.float32)
    y = (xc * jax.lax.rsqrt(var + eps) * g_ref[...] + b_ref[...]).astype(o_ref.dtype)
    for r in range(hrows):
        o_ref[0, r] = y[r * wpad:r * wpad + wout, :]


@functools.partial(jax.jit, static_argnames=("H", "W", "nh"))
def pallas_pool_norm(t, w_dw, gamma, beta, *, H, W, nh):
    """t: (B, 1+H*W, nh*hd) head-major tokens. Depthwise 3x3 pool on the spatial tokens +
    LayerNorm over each head's hd channels (cls token normalized in f32 JAX, it is tiny)."""
    B, N, dim = t.shape
    hd = dim // nh
    Wp = _round_up(W + 2, 8)
    body = t[:, 1:, :].reshape(B, H, W, dim).astype(ACT)
    body = jnp.pad(body, ((0, 0), (1, 2), (1, Wp - W - 1), (0, 0)))
    R_in = (H + 3) * Wp
    x_f = body.reshape(B, R_in, dim)

    w_t = jnp.tile(w_dw.reshape(9, hd), (1, nh)).astype(jnp.float32)       # per-channel taps
    heads = jnp.arange(dim) // hd
    P = (heads[:, None] == heads[None, :]).astype(jnp.float32) / hd        # block-diag mean
    g = jnp.tile(gamma.astype(jnp.float32), nh).reshape(1, dim)
    b = jnp.tile(beta.astype(jnp.float32), nh).reshape(1, dim)

    body_o = pl.pallas_call(
        functools.partial(_pool_norm_kernel, wpad=Wp, wout=W, eps=1e-5),
        out_shape=jax.ShapeDtypeStruct((B, H, W, dim), ACT),
        grid=(B,),
        in_specs=[
            pl.BlockSpec((1, R_in, dim), lambda i: (i, 0, 0)),
            pl.BlockSpec((9, dim), lambda i: (0, 0)),
            pl.BlockSpec((dim, dim), lambda i: (0, 0)),
            pl.BlockSpec((1, dim), lambda i: (0, 0)),
            pl.BlockSpec((1, dim), lambda i: (0, 0)),
        ],
        out_specs=pl.BlockSpec((1, H, W, dim), lambda i: (i, 0, 0, 0)),
        compiler_params=_cparams("parallel"),
    )(x_f, w_t, P, g, b)

    cls = t[:, :1, :].astype(jnp.float32).reshape(B, nh, hd)
    m = jnp.mean(cls, axis=-1, keepdims=True)
    v = jnp.mean(jnp.square(cls - m), axis=-1, keepdims=True)
    cls_n = ((cls - m) * jax.lax.rsqrt(v + 1e-5) * gamma + beta
             ).reshape(B, 1, dim).astype(ACT)
    return jnp.concatenate([cls_n, body_o.reshape(B, H * W, dim)], axis=1)


# ---------------------------------------------------------------------------
# Attention: grid (B, nh, q_tiles); rel-pos bias rebuilt in-kernel from small tables;
# softmax in f32 over the full (never padded) kv axis; residual pooling in-kernel.
# ---------------------------------------------------------------------------
def _attention_kernel(q_ref, k_ref, v_ref, rc_ref, e_ref, o_ref, *, scale, tq):
    q = q_ref[0, 0]                                    # (tq, hd) bf16
    k = k_ref[0, 0]                                    # (N, hd)
    v = v_ref[0, 0]
    s = jax.lax.dot_general(q, k, (((1,), (1,)), ((), ())),
                            preferred_element_type=jnp.float32) * scale
    # decomposed spatial rel-pos bias: (tq, kh+kw) @ one-hot (kh+kw, N)
    s = s + jnp.dot(rc_ref[0, 0], e_ref[...], preferred_element_type=jnp.float32)
    m = jnp.max(s, axis=-1, keepdims=True)
    p = jnp.exp(s - m)
    denom = jnp.sum(p, axis=-1, keepdims=True)
    o = jnp.dot(p.astype(v.dtype), v, preferred_element_type=jnp.float32)
    o = o * pl.reciprocal(denom, approx=True)
    # residual pooling with cls embed: x[:, :, 1:, :] += q[:, :, 1:, :]
    row = pl.program_id(2) * tq + jax.lax.broadcasted_iota(jnp.int32, o.shape, 0)
    o = o + jnp.where(row >= 1, q.astype(jnp.float32), 0.0)
    o_ref[0, 0] = o.astype(o_ref.dtype)


@jax.jit
def pallas_attention(q, k, v, relcat, expand):
    """q,k,v: (B, nh, N, hd); relcat: (B, nh, N, kh+kw); expand: (kh+kw, N) one-hot."""
    B, nh, N, hd = q.shape
    scale = float(hd) ** -0.5
    tq = _round_up(N, 8) if N <= 1024 else 256
    Np = _round_up(N, tq)
    q_p = jnp.pad(q.astype(ACT), ((0, 0), (0, 0), (0, Np - N), (0, 0)))
    rc_p = jnp.pad(relcat.astype(ACT), ((0, 0), (0, 0), (0, Np - N), (0, 0)))
    kk, vv, ee = k.astype(ACT), v.astype(ACT), expand.astype(ACT)
    KW = expand.shape[0]
    out = pl.pallas_call(
        functools.partial(_attention_kernel, scale=scale, tq=tq),
        out_shape=jax.ShapeDtypeStruct((B, nh, Np, hd), ACT),
        grid=(B, nh, Np // tq),
        in_specs=[
            pl.BlockSpec((1, 1, tq, hd), lambda b, h, i: (b, h, i, 0)),
            pl.BlockSpec((1, 1, N, hd), lambda b, h, i: (b, h, 0, 0)),
            pl.BlockSpec((1, 1, N, hd), lambda b, h, i: (b, h, 0, 0)),
            pl.BlockSpec((1, 1, tq, KW), lambda b, h, i: (b, h, i, 0)),
            pl.BlockSpec((KW, N), lambda b, h, i: (0, 0)),
        ],
        out_specs=pl.BlockSpec((1, 1, tq, hd), lambda b, h, i: (b, h, i, 0)),
        compiler_params=_cparams("parallel", "parallel", "parallel"),
    )(q_p, kk, vv, rc_p, ee)
    return out[:, :, :N, :]


def rel_pos_tables(q_heads, rel_h, rel_w, q_shape, k_shape, N):
    """Decomposed spatial rel-pos bias: relcat (B, nh, N, kh+kw) and one-hot E (kh+kw, N)."""
    B, nh, _, hd = q_heads.shape
    qh, qw = q_shape
    kh, kw = k_shape
    # stride_q == stride_kv == 1 -> all ratios in cal_rel_pos_spatial are 1
    dist_h = jnp.arange(qh)[:, None] - jnp.arange(kh)[None, :] + (kh - 1)
    dist_w = jnp.arange(qw)[:, None] - jnp.arange(kw)[None, :] + (kw - 1)
    Rh = rel_h[dist_h]                                 # (qh, kh, hd)
    Rw = rel_w[dist_w]                                 # (qw, kw, hd)
    r_q = q_heads[:, :, 1:, :].astype(jnp.float32).reshape(B, nh, qh, qw, hd)
    rel_h_t = jnp.einsum('byhwc,hkc->byhwk', r_q, Rh)  # (B, nh, qh, qw, kh)
    rel_w_t = jnp.einsum('byhwc,wkc->byhwk', r_q, Rw)  # (B, nh, qh, qw, kw)
    relcat = jnp.concatenate([rel_h_t, rel_w_t], axis=-1).reshape(B, nh, qh * qw, kh + kw)
    relcat = jnp.pad(relcat, ((0, 0), (0, 0), (1, 0), (0, 0)))   # zero row for the cls query
    tok = jnp.arange(N)
    krow = (tok - 1) // kw
    kcol = (tok - 1) - krow * kw
    valid = tok >= 1
    Eh = ((jnp.arange(kh)[:, None] == krow[None, :]) & valid[None, :]).astype(jnp.float32)
    Ew = ((jnp.arange(kw)[:, None] == kcol[None, :]) & valid[None, :]).astype(jnp.float32)
    E = jnp.concatenate([Eh, Ew], axis=0)
    return relcat, E


# ---------------------------------------------------------------------------
# Conv / BN glue
# ---------------------------------------------------------------------------
def im2col(x, kh, kw, stride, pad):
    x = jnp.pad(x, ((0, 0), (pad, pad), (pad, pad), (0, 0)))
    B, Hp, Wp, C = x.shape
    Ho = (Hp - kh) // stride + 1
    Wo = (Wp - kw) // stride + 1
    cols = []
    for dy in range(kh):
        for dx in range(kw):
            cols.append(x[:, dy:dy + stride * (Ho - 1) + 1:stride,
                          dx:dx + stride * (Wo - 1) + 1:stride, :])
    return jnp.concatenate(cols, axis=-1), Ho, Wo


def conv2d(x, w, stride, pad):
    """NHWC conv, no bias.  1x1 -> matmul (subsample first if strided);
    stride-1 kxk -> row-tiled direct Pallas conv; strided kxk -> decimated im2col + matmul."""
    kh, kw, cin, cout = w.shape
    if kh == 1 and kw == 1:
        if stride != 1:
            x = x[:, ::stride, ::stride, :]
        B, H, W, _ = x.shape
        y = pallas_matmul(x.reshape(B * H * W, cin), w.reshape(cin, cout))
        return y.reshape(B, H, W, cout)
    if stride == 1:
        return pallas_conv_s1(x, w)
    B = x.shape[0]
    patches, Ho, Wo = im2col(x, kh, kw, stride, pad)
    y = pallas_matmul(patches.reshape(B * Ho * Wo, kh * kw * cin),
                      w.reshape(kh * kw * cin, cout))
    return y.reshape(B, Ho, Wo, cout)


def batchnorm2d(x, gamma, beta, relu, residual=None, eps=1e-5):
    # train-mode BatchNorm (module never .eval()'d): biased batch statistics,
    # computed in one Pallas reduction pass.
    B, H, W, C = x.shape
    x2 = x.reshape(-1, C)
    s, ss = pallas_channel_stats(x2)
    n = B * H * W
    mean = s / n
    var = jnp.maximum(ss / n - mean * mean, 0.0)
    scale = gamma * jax.lax.rsqrt(var + eps)
    shift = beta - mean * scale
    res = residual.reshape(-1, C) if residual is not None else None
    y = pallas_affine(x2, scale, shift, res, relu=relu)
    return y.reshape(B, H, W, C)


# ---------------------------------------------------------------------------
# Backbone: ResNetFPN_8_2
# ---------------------------------------------------------------------------
def basic_block(x, p, stride):
    y = conv2d(x, p['conv1_w'], stride, 1)
    y = batchnorm2d(y, p['bn1_g'], p['bn1_b'], relu=True)
    y = conv2d(y, p['conv2_w'], 1, 1)
    if stride != 1:
        x_ds = conv2d(x, p['ds_w'], stride, 0)
        x_ds = batchnorm2d(x_ds, p['ds_bn_g'], p['ds_bn_b'], relu=False)
    else:
        x_ds = x
    # relu(x + bn2(conv2(y)))
    return batchnorm2d(y, p['bn2_g'], p['bn2_b'], relu=True, residual=x_ds)


def resnet_fpn(x, p):
    x0 = conv2d(x, p['conv1_w'], 2, 3)
    x0 = batchnorm2d(x0, p['bn1_g'], p['bn1_b'], relu=True)
    x1 = basic_block(x0, p['l1b1'], 1)
    x1 = basic_block(x1, p['l1b2'], 1)
    x2 = basic_block(x1, p['l2b1'], 2)
    x2 = basic_block(x2, p['l2b2'], 1)
    x3 = basic_block(x2, p['l3b1'], 2)
    x3 = basic_block(x3, p['l3b2'], 1)
    return conv2d(x3, p['out_w'], 1, 0)


# ---------------------------------------------------------------------------
# MultiScale attention / block / transformer
# ---------------------------------------------------------------------------
def multiscale_attention(query, x, hw_shape, p, num_heads, residual):
    """MultiScaleAttention.forward with query_x = [query, x]; the block residual
    (x + x_block) is fused into the output-projection matmul epilogue."""
    B, N, dim = x.shape
    hd = dim // num_heads
    H, W = hw_shape

    qkv = pallas_matmul(x.reshape(B * N, dim), p['qkv_w']).reshape(B, N, 3 * dim)
    k_t = qkv[:, :, dim:2 * dim]                      # head-major channel layout
    v_t = qkv[:, :, 2 * dim:]
    q_t = pallas_matmul(query.reshape(B * N, dim), p['qkv2_w']).reshape(B, N, dim)

    q_t = pallas_pool_norm(q_t, p['pool_q_w'], p['norm_q_g'], p['norm_q_b'],
                           H=H, W=W, nh=num_heads)
    k_t = pallas_pool_norm(k_t, p['pool_k_w'], p['norm_k_g'], p['norm_k_b'],
                           H=H, W=W, nh=num_heads)
    v_t = pallas_pool_norm(v_t, p['pool_v_w'], p['norm_v_g'], p['norm_v_b'],
                           H=H, W=W, nh=num_heads)

    def to_heads(t):
        return t.reshape(B, N, num_heads, hd).transpose(0, 2, 1, 3)

    q, k, v = to_heads(q_t), to_heads(k_t), to_heads(v_t)
    relcat, expand = rel_pos_tables(q, p['rel_pos_h'], p['rel_pos_w'], (H, W), (H, W), N)
    out = pallas_attention(q, k, v, relcat, expand)    # includes residual-pooling add
    out = out.transpose(0, 2, 1, 3).reshape(B * N, dim)
    out = pallas_matmul(out, p['proj_w'], p['proj_b'],
                        residual=residual.reshape(B * N, dim))
    return out.reshape(B, N, dim), [H, W]


def multiscale_block(query, x, hw_shape, p, num_heads):
    """MultiScaleBlock.forward with query_x = [query, x]."""
    B, N, dim = x.shape
    x_norm = pallas_layernorm(x.reshape(-1, dim), p['norm1_g'], p['norm1_b']).reshape(B, N, dim)
    q_norm = pallas_layernorm(query.reshape(-1, dim), p['norm1_g'], p['norm1_b']).reshape(B, N, dim)
    # attn([x_norm, q_norm]): attn.query = x_norm, attn.x = q_norm; block residual = x
    x_out, hw_new = multiscale_attention(x_norm, q_norm, hw_shape, p['attn'],
                                         num_heads, residual=x)
    x_norm2 = pallas_layernorm(x_out.reshape(-1, dim), p['norm2_g'], p['norm2_b'])
    h = pallas_matmul(x_norm2, p['fc1_w'], p['fc1_b'], activation="gelu")   # fused exact GELU
    out = pallas_matmul(h, p['fc2_w'], p['fc2_b'],
                        residual=x_out.reshape(B * N, dim))                 # fused x_out + mlp
    return out.reshape(B, N, dim), hw_new


def local_scale_transformer(feat0, feat1, blocks, hw_shape, cross):
    shape = list(hw_shape)                            # scale=False -> never halved
    for i in range(3):
        if not cross:
            feat0, _ = multiscale_block(feat0, feat0, shape, blocks[i], NUM_HEADS)
            feat1, shape = multiscale_block(feat1, feat1, shape, blocks[i], NUM_HEADS)
        else:
            feat0, _ = multiscale_block(feat0, feat1, shape, blocks[i], NUM_HEADS)
            feat1, shape = multiscale_block(feat1, feat0, shape, blocks[i], NUM_HEADS)
    return feat0, feat1


# ---------------------------------------------------------------------------
# PositionEncodingSine (LoFTR, temp_bug_fix=True)
# TODO(synk): PositionEncodingSine is not in the provided source; standard LoFTR
#             implementation (temp_bug_fix=True) reproduced here.
# ---------------------------------------------------------------------------
def make_pe(d_model, H, W):
    y_pos = jnp.cumsum(jnp.ones((H, W), jnp.float32), axis=0)
    x_pos = jnp.cumsum(jnp.ones((H, W), jnp.float32), axis=1)
    div = jnp.exp(jnp.arange(0, d_model // 2, 2, dtype=jnp.float32) *
                  (-math.log(10000.0) / (d_model // 2)))[:, None, None]
    pe = jnp.zeros((d_model, H, W), jnp.float32)
    pe = pe.at[0::4].set(jnp.sin(x_pos[None] * div))
    pe = pe.at[1::4].set(jnp.cos(x_pos[None] * div))
    pe = pe.at[2::4].set(jnp.sin(y_pos[None] * div))
    pe = pe.at[3::4].set(jnp.cos(y_pos[None] * div))
    return jnp.transpose(pe, (1, 2, 0))               # (H, W, d) NHWC


# ---------------------------------------------------------------------------
# MUFTR forward
# ---------------------------------------------------------------------------
def muftr_forward(image0_nchw, image1_nchw, params):
    x0 = jnp.transpose(image0_nchw, (0, 2, 3, 1))     # NCHW -> NHWC
    x1 = jnp.transpose(image1_nchw, (0, 2, 3, 1))
    f0 = resnet_fpn(x0, params['backbone'])
    f1 = resnet_fpn(x1, params['backbone'])
    B, Hc, Wc, d = f0.shape
    pe = params['pe'][None].astype(f0.dtype)
    f0 = (f0 + pe).reshape(B, Hc * Wc, d)
    f1 = (f1 + pe).reshape(B, Hc * Wc, d)
    cls = jnp.broadcast_to(params['cls_token'].astype(f0.dtype), (B, 1, d))
    f0 = jnp.concatenate([cls, f0], axis=1)
    f1 = jnp.concatenate([cls, f1], axis=1)
    f0, f1 = local_scale_transformer(f0, f1, params['coarse'], [Hc, Wc], cross=False)
    f0, f1 = local_scale_transformer(f0, f1, params['cross'], [Hc, Wc], cross=True)
    out_feat = jnp.concatenate([f0[:, 0], f1[:, 0]], axis=1)     # (B, 2*d)
    return pallas_matmul(out_feat, params['mlp_w'], out_dtype=jnp.float32)


# ---------------------------------------------------------------------------
# Deterministic synthetic parameters
# ---------------------------------------------------------------------------
def _normal(key, shape, std):
    return jax.random.normal(key, shape, jnp.float32) * std


def init_basic_block(key, cin, cout, stride):
    ks = jax.random.split(key, 3)
    p = {
        'conv1_w': _normal(ks[0], (3, 3, cin, cout), 0.1),
        'conv2_w': _normal(ks[1], (3, 3, cout, cout), 0.1),
        'bn1_g': jnp.ones((cout,)), 'bn1_b': jnp.zeros((cout,)),
        'bn2_g': jnp.ones((cout,)), 'bn2_b': jnp.zeros((cout,)),
    }
    if stride != 1:
        p['ds_w'] = _normal(ks[2], (1, 1, cin, cout), 0.1)
        p['ds_bn_g'] = jnp.ones((cout,))
        p['ds_bn_b'] = jnp.zeros((cout,))
    return p


def init_backbone(key, initial_dim, dims):
    ks = jax.random.split(key, 8)
    return {
        'conv1_w': _normal(ks[0], (7, 7, 1, initial_dim), 0.1),
        'bn1_g': jnp.ones((initial_dim,)), 'bn1_b': jnp.zeros((initial_dim,)),
        'l1b1': init_basic_block(ks[1], initial_dim, dims[0], 1),
        'l1b2': init_basic_block(ks[2], dims[0], dims[0], 1),
        'l2b1': init_basic_block(ks[3], dims[0], dims[1], 2),
        'l2b2': init_basic_block(ks[4], dims[1], dims[1], 1),
        'l3b1': init_basic_block(ks[5], dims[1], dims[2], 2),
        'l3b2': init_basic_block(ks[6], dims[2], dims[2], 1),
        'out_w': _normal(ks[7], (1, 1, dims[2], dims[2]), 0.1),
    }


def init_attn(key, dim, nh, size):
    hd = dim // nh
    ks = jax.random.split(key, 8)
    return {
        'qkv_w': _normal(ks[0], (dim, 3 * dim), 0.05),
        'qkv2_w': _normal(ks[1], (dim, dim), 0.05),
        'proj_w': _normal(ks[2], (dim, dim), 0.05),
        'proj_b': jnp.zeros((dim,)),
        'pool_q_w': _normal(ks[3], (3, 3, hd), 0.1),
        'pool_k_w': _normal(ks[4], (3, 3, hd), 0.1),
        'pool_v_w': _normal(ks[5], (3, 3, hd), 0.1),
        'norm_q_g': jnp.ones((hd,)), 'norm_q_b': jnp.zeros((hd,)),
        'norm_k_g': jnp.ones((hd,)), 'norm_k_b': jnp.zeros((hd,)),
        'norm_v_g': jnp.ones((hd,)), 'norm_v_b': jnp.zeros((hd,)),
        'rel_pos_h': _normal(ks[6], (2 * size - 1, hd), 0.02),
        'rel_pos_w': _normal(ks[7], (2 * size - 1, hd), 0.02),
    }


def init_block(key, dim, nh, size, mlp_ratio=4.0):
    ks = jax.random.split(key, 3)
    hidden = int(dim * mlp_ratio)
    return {
        'norm1_g': jnp.ones((dim,)), 'norm1_b': jnp.zeros((dim,)),
        'norm2_g': jnp.ones((dim,)), 'norm2_b': jnp.zeros((dim,)),
        'attn': init_attn(ks[0], dim, nh, size),
        'fc1_w': _normal(ks[1], (dim, hidden), 0.05), 'fc1_b': jnp.zeros((hidden,)),
        'fc2_w': _normal(ks[2], (hidden, dim), 0.05), 'fc2_b': jnp.zeros((dim,)),
    }


def init_muftr(key, d_model, initial_dim, block_dims, hc, wc):
    ks = jax.random.split(key, 9)
    return {
        'backbone': init_backbone(ks[0], initial_dim, block_dims),
        'pe': make_pe(d_model, hc, wc),
        'cls_token': _normal(ks[1], (1, 1, d_model), 1.0),
        'coarse': [init_block(ks[2 + i], d_model, NUM_HEADS, hc) for i in range(3)],
        'cross': [init_block(ks[5 + i], d_model, NUM_HEADS, hc) for i in range(3)],
        'mlp_w': _normal(ks[8], (2 * d_model, 1), 0.05),
    }


if __name__ == "__main__":
    key = jax.random.PRNGKey(0)
    k_img0, k_img1, k_par = jax.random.split(key, 3)

    # Small shapes consistent with the module: original is (2,1,320,320)->40x40 tokens,
    # d_model=256; here (2,1,64,64)->8x8 tokens, d_model=32, heads=4.
    B, H_img, W_img = 2, 64, 64
    d_model, initial_dim, block_dims = 32, 16, (16, 24, 32)
    hc, wc = H_img // 8, W_img // 8

    image0 = jax.random.uniform(k_img0, (B, 1, H_img, W_img), jnp.float32)
    image1 = jax.random.uniform(k_img1, (B, 1, H_img, W_img), jnp.float32)

    params = init_muftr(k_par, d_model, initial_dim, block_dims, hc, wc)
    label = muftr_forward(image0, image1, params)
    label = jax.block_until_ready(label)
    assert label.shape == (B, 1) and label.dtype == jnp.float32
    print("KERNEL_OK")
</pallas_src>

<mosaic_0001>
module attributes {stable_mosaic.version = 11 : i64} {
  func.func @_matmul_kernel(%arg0: i32, %arg1: i32, %arg2: memref<512x49xbf16, #tpu.memory_space<vmem>>, %arg3: memref<49x16xbf16, #tpu.memory_space<vmem>>, %arg4: memref<1x16xf32, #tpu.memory_space<vmem>>, %arg5: memref<512x16xbf16, #tpu.memory_space<vmem>>) attributes {dimension_semantics = [#tpu.dimension_semantics<parallel>, #tpu.dimension_semantics<parallel>], iteration_bounds = array<i64: 4, 1>, scalar_prefetch = 0 : i64, scratch_operands = 0 : i64, tpu.core_type = #tpu.core_type<tc>, window_params = [{transform_indices = @transform_0, window_bounds = array<i64: 512, 49>}, {transform_indices = @transform_1, window_bounds = array<i64: 49, 16>}, {transform_indices = @transform_2, window_bounds = array<i64: 1, 16>}, {transform_indices = @transform_3, window_bounds = array<i64: 512, 16>}]} {
    %c0 = arith.constant 0 : index
    %c0_0 = arith.constant 0 : index
    %0 = vector.load %arg2[%c0, %c0_0] : memref<512x49xbf16, #tpu.memory_space<vmem>>, vector<512x49xbf16>
    %c0_1 = arith.constant 0 : index
    %c0_2 = arith.constant 0 : index
    %1 = vector.load %arg3[%c0_1, %c0_2] : memref<49x16xbf16, #tpu.memory_space<vmem>>, vector<49x16xbf16>
    %cst = arith.constant dense<0.000000e+00> : vector<512x16xf32>
    %2 = tpu.matmul %0, %1, %cst {dimension_numbers = #tpu.dot_dimension_numbers<[1], [0], [0], [1], [0, 0, 1, 1], [], []>} : vector<512x49xbf16>, vector<49x16xbf16>, vector<512x16xf32> -> vector<512x16xf32>
    %c0_3 = arith.constant 0 : index
    %c0_4 = arith.constant 0 : index
    %3 = vector.load %arg4[%c0_3, %c0_4] : memref<1x16xf32, #tpu.memory_space<vmem>>, vector<1x16xf32>
    %4 = vector.broadcast %3 : vector<1x16xf32> to vector<512x16xf32>
    %5 = arith.addf %2, %4 : vector<512x16xf32>
    %6 = arith.truncf %5 : vector<512x16xf32> to vector<512x16xbf16>
    %c0_5 = arith.constant 0 : index
    %c0_6 = arith.constant 0 : index
    %7 = vector.load %arg5[%c0_5, %c0_6] : memref<512x16xbf16, #tpu.memory_space<vmem>>, vector<512x16xbf16>
    tpu.vector_store %arg5[%c0_5, %c0_6], %6 {strides = array<i32>} : memref<512x16xbf16, #tpu.memory_space<vmem>>, vector<512x16xbf16>,
    return
  }
  func.func @transform_0(%arg0: i32, %arg1: i32) -> (i32, i32) {
    %c0_i32 = arith.constant 0 : i32
    %c0_i32_0 = arith.constant 0 : i32
    return %arg0, %c0_i32 : i32, i32
  }
  func.func @transform_1(%arg0: i32, %arg1: i32) -> (i32, i32) {
    %c0_i32 = arith.constant 0 : i32
    %c0_i32_0 = arith.constant 0 : i32
    return %c0_i32, %arg1 : i32, i32
  }
  func.func @transform_2(%arg0: i32, %arg1: i32) -> (i32, i32) {
    %c0_i32 = arith.constant 0 : i32
    %c0_i32_0 = arith.constant 0 : i32
    return %c0_i32, %arg1 : i32, i32
  }
  func.func @transform_3(%arg0: i32, %arg1: i32) -> (i32, i32) {
    %c0_i32 = arith.constant 0 : i32
    return %arg0, %arg1 : i32, i32
  }
}

</mosaic_0001>

<llo_original>
// kernel: pallas_matmul.1
$region0: #{pallas_matmul.1}
  #allocation0 [shape = 'u32[]', space=smem, size = 0x4, offset = 0x4, fixed_abs, tag = 'smem constant byte address 0x4 - core index']
  #allocation1 [shape = 'u32[72,128]{1,0:T(1,128)}', space=vmem, size = 0x9000, scoped, tag = 'internal scratch']
  %s0 = inlined_call_operand.vmem [shape: bf16[2048,49], index: 0, kind: input, shape index: {}]
  %s1 = inlined_call_operand.vmem [shape: bf16[49,16], index: 1, kind: input, shape index: {}]
  %s2 = inlined_call_operand.vmem [shape: f32[1,16], index: 2, kind: input, shape index: {}]
  %s3 = inlined_call_operand.vmem [shape: bf16[2048,16], index: 3, kind: output, shape index: {}]
  %s4 = sld [smem:[#allocation0]]
  $region45: #{pallas_matmul.1} parent=0
    _
  %s6 = ssub.s32 1, %s4
  %s7 = scalar_select 0, %s6, %s4
  loop: start=0, step=1, limit=6
  $region2: #{pallas_matmul.1} parent=0 // loop_pre_header
    _
  $region3: #{pallas_matmul.1} parent=0 // loop_header
    %s9 = sphi 0, %s13
    %p10 = scmp.ge.s32.totalorder %s9, 6
    %s16 = sphi 0, %s28
    %s17 = sphi 0, %s24
    %s18 = sphi 0, %s16
    %s19 = sphi 0, %s17
    %s20 = sphi 0, %s18
    %s21 = sphi 0, %s19
    %s31 = sphi 0, %s33
    %s34 = sphi 0, %s31
    %s35 = sphi 0, %s34
    %s51 = sphi 0, %s35
    %s57 = sphi 0, %s59
    %s60 = sphi 0, %s57
    %s61 = sphi 0, %s60
    %s77 = sphi 0, %s61
    %s83 = sphi 0, %s85
    %s86 = sphi 0, %s83
    %s87 = sphi 0, %s86
    %s103 = sphi 0, %s87
    %s111 = sphi 0, %s113
    %s114 = sphi 0, %s111
    %s115 = sphi 0, %s114
    %s131 = sphi 0, %s115
  $region4: #{pallas_matmul.1} parent=0 // loop_header_branch
    %12 = sbr.rel (%p10) target = $region8
  $region5: #{pallas_matmul.1} parent=0 // loop_body
    %s14 = ssub.s32 %s9, 1
    %s15 = ssub.s32 %s9, 2
    %s22 = sadd.s32 1, %s17
    %p23 = scmp.ge.s32.totalorder %s22, 1
    %s24 = scalar_select %p23, 0, %s22
    %s25 = sadd.s32 1, %s16
    %s26 = scalar_select %p23, %s25, %s16
    %p27 = scmp.ge.s32.totalorder %s26, 4
    %s28 = scalar_select %p27, 0, %s26
    %s29 = ssub.s32 %s16, %s28
    %p30 = scmp.eq.s32.totalorder %s29, 0
    %s32 = sadd.s32 %s31, 1
    %s33 = scalar_select %p30, %s31, %s32
    %p36 = pneg %p30
    %p37 = scmp.eq.s32.totalorder %s9, 3
    %p38 = por %p36, %p37
    %p39 = scmp.ne.s32.totalorder %s31, %s34
    %p40 = scmp.eq.s32.totalorder %s9, 0
    %p41 = por %p39, %p40
    %p42 = scmp.ne.s32.totalorder %s31, %s34
    %p43 = scmp.eq.s32.totalorder %s14, 3
    %p44 = por %p42, %p43
    %p45 = scmp.ne.s32.totalorder %s34, %s35
    %p46 = scmp.eq.s32.totalorder %s14, 0
    %p47 = por %p45, %p46
    %p48 = scmp.ne.s32.totalorder %s34, %s35
    %p49 = scmp.eq.s32.totalorder %s15, 3
    %p50 = por %p48, %p49
    %p52 = scmp.ne.s32.totalorder %s35, %s51
    %p53 = scmp.eq.s32.totalorder %s15, 0
    %p54 = por %p52, %p53
    %s55 = ssub.s32 %s17, %s24
    %p56 = scmp.eq.s32.totalorder %s55, 0
    %s58 = sadd.s32 %s57, 1
    %s59 = scalar_select %p56, %s57, %s58
    %p62 = pneg %p56
    %p63 = scmp.eq.s32.totalorder %s9, 3
    %p64 = por %p62, %p63
    %p65 = scmp.ne.s32.totalorder %s57, %s60
    %p66 = scmp.eq.s32.totalorder %s9, 0
    %p67 = por %p65, %p66
    %p68 = scmp.ne.s32.totalorder %s57, %s60
    %p69 = scmp.eq.s32.totalorder %s14, 3
    %p70 = por %p68, %p69
    %p71 = scmp.ne.s32.totalorder %s60, %s61
    %p72 = scmp.eq.s32.totalorder %s14, 0
    %p73 = por %p71, %p72
    %p74 = scmp.ne.s32.totalorder %s60, %s61
    %p75 = scmp.eq.s32.totalorder %s15, 3
    %p76 = por %p74, %p75
    %p78 = scmp.ne.s32.totalorder %s61, %s77
    %p79 = scmp.eq.s32.totalorder %s15, 0
    %p80 = por %p78, %p79
    %s81 = ssub.s32 %s17, %s24
    %p82 = scmp.eq.s32.totalorder %s81, 0
    %s84 = sadd.s32 %s83, 1
    %s85 = scalar_select %p82, %s83, %s84
    %p88 = pneg %p82
    %p89 = scmp.eq.s32.totalorder %s9, 3
    %p90 = por %p88, %p89
    %p91 = scmp.ne.s32.totalorder %s83, %s86
    %p92 = scmp.eq.s32.totalorder %s9, 0
    %p93 = por %p91, %p92
    %p94 = scmp.ne.s32.totalorder %s83, %s86
    %p95 = scmp.eq.s32.totalorder %s14, 3
    %p96 = por %p94, %p95
    %p97 = scmp.ne.s32.totalorder %s86, %s87
    %p98 = scmp.eq.s32.totalorder %s14, 0
    %p99 = por %p97, %p98
    %p100 = scmp.ne.s32.totalorder %s86, %s87
    %p101 = scmp.eq.s32.totalorder %s15, 3
    %p102 = por %p100, %p101
    %p104 = scmp.ne.s32.totalorder %s87, %s103
    %p105 = scmp.eq.s32.totalorder %s15, 0
    %p106 = por %p104, %p105
    %s107 = ssub.s32 %s16, %s28
    %s108 = ssub.s32 %s17, %s24
    %s109 = sor.u32 %s107, %s108
    %p110 = scmp.eq.s32.totalorder %s109, 0
    %s112 = sadd.s32 %s111, 1
    %s113 = scalar_select %p110, %s111, %s112
    %p116 = pneg %p110
    %p117 = scmp.eq.s32.totalorder %s9, 3
    %p118 = por %p116, %p117
    %p119 = scmp.ne.s32.totalorder %s111, %s114
    %p120 = scmp.eq.s32.totalorder %s9, 0
    %p121 = por %p119, %p120
    %p122 = scmp.ne.s32.totalorder %s111, %s114
    %p123 = scmp.eq.s32.totalorder %s14, 3
    %p124 = por %p122, %p123
    %p125 = scmp.ne.s32.totalorder %s114, %s115
    %p126 = scmp.eq.s32.totalorder %s14, 0
    %p127 = por %p125, %p126
    %p128 = scmp.ne.s32.totalorder %s114, %s115
    %p129 = scmp.eq.s32.totalorder %s15, 3
    %p130 = por %p128, %p129
    %p132 = scmp.ne.s32.totalorder %s115, %s131
    %p133 = scmp.eq.s32.totalorder %s15, 0
    %p134 = por %p132, %p133
    %p135 = scmp.le.s32.totalorder 1, %s9
    %p136 = scmp.lt.s32.totalorder %s9, 5
    %p137 = pnand %p135, %p136
    %p138 = pneg %p137
    // Predicated region
    $region9: #{pallas_matmul.1} parent=5 // pred_check
      _
    $region10: #{pallas_matmul.1} parent=5 // pred_check_branch
      %140 = sbr.rel (%p137) target = $region12
    $region11: #{pallas_matmul.1} parent=5 // pred_region
      %s141 = ssub.s32 %s9, 1
      // Predicated region
      $region13: #{pallas_matmul.1} parent=11 // pred_check
        %p142 = pneg %p73
      $region14: #{pallas_matmul.1} parent=11 // pred_check_branch
        %144 = sbr.rel (%p142) target = $region16
      $region15: #{pallas_matmul.1} parent=11 // pred_region
        %p145 = scmp.lt.s32.totalorder %s19, 0
        %s146 = scalar_select %p145, %s19, 0
        %s147 = smul.addr %s146, 4
        %s148 = scalar_lea.vmem %s1, %s147
      $region16: #{pallas_matmul.1} parent=11 // pred_fallthru
        _
      // Predicated region
      $region17: #{pallas_matmul.1} parent=11 // pred_check
        %p149 = pneg %p99
      $region18: #{pallas_matmul.1} parent=11 // pred_check_branch
        %151 = sbr.rel (%p149) target = $region20
      $region19: #{pallas_matmul.1} parent=11 // pred_region
        %p152 = scmp.lt.s32.totalorder %s19, 0
        %s153 = scalar_select %p152, %s19, 0
        %s154 = scalar_lea.vmem %s2, %s153
      $region20: #{pallas_matmul.1} parent=11 // pred_fallthru
        _
    $region12: #{pallas_matmul.1} parent=5 // pred_fallthru
      _
    %p155 = scmp.lt.s32.totalorder %s9, 4
    // Predicated region
    $region21: #{pallas_matmul.1} parent=5 // pred_check
      %p156 = pneg %p155
    $region22: #{pallas_matmul.1} parent=5 // pred_check_branch
      %158 = sbr.rel (%p156) target = $region24
    $region23: #{pallas_matmul.1} parent=5 // pred_region
      // Predicated region
      $region25: #{pallas_matmul.1} parent=23 // pred_check
        %p159 = pneg %p41
      $region26: #{pallas_matmul.1} parent=23 // pred_check_branch
        %161 = sbr.rel (%p159) target = $region28
      $region27: #{pallas_matmul.1} parent=23 // pred_region
        %s162 = smul.u32 64, %s16
        %p163 = scmp.lt.s32.totalorder %s162, 255
        %s164 = scalar_select %p163, %s162, 255
        %s165 = smul.addr %s164, 4
        %s166 = scalar_lea.vmem %s0, %s165
        %s167 = smul.u32 64, %s16
      $region28: #{pallas_matmul.1} parent=23 // pred_fallthru
        _
    $region24: #{pallas_matmul.1} parent=5 // pred_fallthru
      _
    %p168 = scmp.le.s32.totalorder 1, %s9
    %p169 = scmp.lt.s32.totalorder %s9, 5
    %p170 = pnand %p168, %p169
    %p171 = pneg %p170
    // Predicated region
    $region29: #{pallas_matmul.1} parent=5 // pred_check
      _
    $region30: #{pallas_matmul.1} parent=5 // pred_check_branch
      %173 = sbr.rel (%p170) target = $region32
    $region31: #{pallas_matmul.1} parent=5 // pred_region
      %s174 = ssub.s32 %s9, 1
      %s175 = smul.u32 64, %s18
      %p176 = scmp.lt.s32.totalorder %s175, 255
      %s177 = scalar_select %p176, %s175, 255
      %s178 = smul.addr %s177, 4
      %s179 = scalar_lea.vmem %s0, %s178
      %p180 = pneg %p47
      %p181 = pneg %p44
      %p182 = scmp.lt.s32.totalorder %s19, 0
      %s183 = scalar_select %p182, %s19, 0
      %s184 = smul.addr %s183, 4
      %s185 = scalar_lea.vmem %s1, %s184
      %p186 = pneg %p73
      %p187 = pneg %p70
      %p188 = scmp.lt.s32.totalorder %s19, 0
      %s189 = scalar_select %p188, %s19, 0
      %s190 = scalar_lea.vmem %s2, %s189
      %p191 = pneg %p99
      %p192 = pneg %p96
      %p193 = pneg %p127
      %p194 = pneg %p124
      %s195 = smul.u32 64, %s18
      %p196 = scmp.lt.s32.totalorder %s195, 255
      %s197 = scalar_select %p196, %s195, 255
      %p198 = scmp.lt.s32.totalorder %s19, 0
      %s199 = scalar_select %p198, %s19, 0
      %s200 = sadd.s32 %s199, %s197
      %s201 = smul.addr %s200, 4
      %s202 = scalar_lea.vmem %s3, %s201
      %s203 = smul.u32 64, %s18
      %p204 = scmp.lt.s32.totalorder %s203, 255
      %s205 = scalar_select %p204, %s203, 255
      %s206 = smul.addr %s205, 4
      %s207 = scalar_lea.vmem %s0, %s206
      %s208 = smul.u32 64, %s18
      %p209 = scmp.lt.s32.totalorder %s19, 0
      %s210 = scalar_select %p209, %s19, 0
      %s211 = smul.addr %s210, 4
      %s212 = scalar_lea.vmem %s1, %s211
      %p213 = scmp.lt.s32.totalorder %s19, 0
      %s214 = scalar_select %p213, %s19, 0
      %s215 = scalar_lea.vmem %s2, %s214
      %s216 = smul.u32 64, %s18
      %p217 = scmp.lt.s32.totalorder %s216, 255
      %s218 = scalar_select %p217, %s216, 255
      %p219 = scmp.lt.s32.totalorder %s19, 0
      %s220 = scalar_select %p219, %s19, 0
      %s221 = sadd.s32 %s220, %s218
      %s222 = smul.addr %s221, 4
      %s223 = scalar_lea.vmem %s3, %s222
      %s224 = smul.u32 64, %s18
      %v226 = vld [vmem:[%s207] sm:$0xf]
      %v227 = vld [vmem:[%s207 + $0x4] sm:$0xf]
      %v228 = vld [vmem:[%s207 + $0x8] sm:$0xf]
      %v229 = vld [vmem:[%s207 + $0xc] sm:$0xf]
      %v230 = vld [vmem:[%s207 + $0x10] sm:$0xf]
      %v231 = vld [vmem:[%s207 + $0x14] sm:$0xf]
      %v232 = vld [vmem:[%s207 + $0x18] sm:$0xf]
      %v233 = vld [vmem:[%s207 + $0x1c] sm:$0xf]
      %v234 = vld [vmem:[%s207 + $0x20] sm:$0xf]
      %v235 = vld [vmem:[%s207 + $0x24] sm:$0xf]
      %v236 = vld [vmem:[%s207 + $0x28] sm:$0xf]
      %v237 = vld [vmem:[%s207 + $0x2c] sm:$0xf]
      %v238 = vld [vmem:[%s207 + $0x30] sm:$0xf]
      %v239 = vld [vmem:[%s207 + $0x34] sm:$0xf]
      %v240 = vld [vmem:[%s207 + $0x38] sm:$0xf]
      %v241 = vld [vmem:[%s207 + $0x3c] sm:$0xf]
      %v242 = vld [vmem:[%s207 + $0x40] sm:$0xf]
      %v243 = vld [vmem:[%s207 + $0x44] sm:$0xf]
      %v244 = vld [vmem:[%s207 + $0x48] sm:$0xf]
      %v245 = vld [vmem:[%s207 + $0x4c] sm:$0xf]
      %v246 = vld [vmem:[%s207 + $0x50] sm:$0xf]
      %v247 = vld [vmem:[%s207 + $0x54] sm:$0xf]
      %v248 = vld [vmem:[%s207 + $0x58] sm:$0xf]
      %v249 = vld [vmem:[%s207 + $0x5c] sm:$0xf]
      %v250 = vld [vmem:[%s207 + $0x60] sm:$0xf]
      %v251 = vld [vmem:[%s207 + $0x64] sm:$0xf]
      %v252 = vld [vmem:[%s207 + $0x68] sm:$0xf]
      %v253 = vld [vmem:[%s207 + $0x6c] sm:$0xf]
      %v254 = vld [vmem:[%s207 + $0x70] sm:$0xf]
      %v255 = vld [vmem:[%s207 + $0x74] sm:$0xf]
      %v256 = vld [vmem:[%s207 + $0x78] sm:$0xf]
      %v257 = vld [vmem:[%s207 + $0x7c] sm:$0xf]
      %v258 = vld [vmem:[%s207 + $0x80] sm:$0xf]
      %v259 = vld [vmem:[%s207 + $0x84] sm:$0xf]
      %v260 = vld [vmem:[%s207 + $0x88] sm:$0xf]
      %v261 = vld [vmem:[%s207 + $0x8c] sm:$0xf]
      %v262 = vld [vmem:[%s207 + $0x90] sm:$0xf]
      %v263 = vld [vmem:[%s207 + $0x94] sm:$0xf]
      %v264 = vld [vmem:[%s207 + $0x98] sm:$0xf]
      %v265 = vld [vmem:[%s207 + $0x9c] sm:$0xf]
      %v266 = vld [vmem:[%s207 + $0xa0] sm:$0xf]
      %v267 = vld [vmem:[%s207 + $0xa4] sm:$0xf]
      %v268 = vld [vmem:[%s207 + $0xa8] sm:$0xf]
      %v269 = vld [vmem:[%s207 + $0xac] sm:$0xf]
      %v270 = vld [vmem:[%s207 + $0xb0] sm:$0xf]
      %v271 = vld [vmem:[%s207 + $0xb4] sm:$0xf]
      %v272 = vld [vmem:[%s207 + $0xb8] sm:$0xf]
      %v273 = vld [vmem:[%s207 + $0xbc] sm:$0xf]
      %v274 = vld [vmem:[%s207 + $0xc0] sm:$0xf]
      %v275 = vld [vmem:[%s207 + $0xc4] sm:$0xf]
      %v276 = vld [vmem:[%s207 + $0xc8] sm:$0xf]
      %v277 = vld [vmem:[%s207 + $0xcc] sm:$0xf]
      %v278 = vld [vmem:[%s207 + $0xd0] sm:$0xf]
      %v279 = vld [vmem:[%s207 + $0xd4] sm:$0xf]
      %v280 = vld [vmem:[%s207 + $0xd8] sm:$0xf]
      %v281 = vld [vmem:[%s207 + $0xdc] sm:$0xf]
      %v282 = vld [vmem:[%s207 + $0xe0] sm:$0xf]
      %v283 = vld [vmem:[%s207 + $0xe4] sm:$0xf]
      %v284 = vld [vmem:[%s207 + $0xe8] sm:$0xf]
      %v285 = vld [vmem:[%s207 + $0xec] sm:$0xf]
      %v286 = vld [vmem:[%s207 + $0xf0] sm:$0xf]
      %v287 = vld [vmem:[%s207 + $0xf4] sm:$0xf]
      %v288 = vld [vmem:[%s207 + $0xf8] sm:$0xf]
      %v289 = vld [vmem:[%s207 + $0xfc] sm:$0xf]
      %v290 = vld [vmem:[%s212] sm:$0xf]
      %v291 = vld [vmem:[%s212 + $0x4] sm:$0xf]
      %v292 = vld [vmem:[%s212 + $0x8] sm:$0xf]
      %v293 = vld [vmem:[%s212 + $0xc] sm:$0xf]
      %v294 = vld [vmem:[%s212 + $0x10] sm:$0xf]
      %v295 = vld [vmem:[%s212 + $0x14] sm:$0xf]
      %v296 = vld [vmem:[%s212 + $0x18] sm:$0x1]
      %v297 = vld [vmem:[%s215] sm:$0x1]
      %v299 = vperm.slane %v297, 0
      %v365 = vunpack.c.l.b16 %v226
      %v366 = vunpack.c.l.b16 %v227
      %v367 = vunpack.c.l.b16 %v228
      %v368 = vunpack.c.l.b16 %v229
      %v369 = vunpack.c.l.b16 %v230
      %v370 = vunpack.c.l.b16 %v231
      %v371 = vunpack.c.l.b16 %v232
      %v372 = vunpack.c.l.b16 %v233
      %v373 = vunpack.c.l.b16 %v234
      %v374 = vunpack.c.l.b16 %v235
      %v375 = vunpack.c.l.b16 %v236
      %v376 = vunpack.c.l.b16 %v237
      %v377 = vunpack.c.l.b16 %v238
      %v378 = vunpack.c.l.b16 %v239
      %v379 = vunpack.c.l.b16 %v240
      %v380 = vunpack.c.l.b16 %v241
      %v381 = vunpack.c.l.b16 %v242
      %v382 = vunpack.c.l.b16 %v243
      %v383 = vunpack.c.l.b16 %v244
      %v384 = vunpack.c.l.b16 %v245
      %v385 = vunpack.c.l.b16 %v246
      %v386 = vunpack.c.l.b16 %v247
      %v387 = vunpack.c.l.b16 %v248
      %v388 = vunpack.c.l.b16 %v249
      %v389 = vunpack.c.l.b16 %v250
      %v390 = vunpack.c.l.b16 %v251
      %v391 = vunpack.c.l.b16 %v252
      %v392 = vunpack.c.l.b16 %v253
      %v393 = vunpack.c.l.b16 %v254
      %v394 = vunpack.c.l.b16 %v255
      %v395 = vunpack.c.l.b16 %v256
      %v396 = vunpack.c.l.b16 %v257
      %v397 = vunpack.c.l.b16 %v258
      %v398 = vunpack.c.l.b16 %v259
      %v399 = vunpack.c.l.b16 %v260
      %v400 = vunpack.c.l.b16 %v261
      %v401 = vunpack.c.l.b16 %v262
      %v402 = vunpack.c.l.b16 %v263
      %v403 = vunpack.c.l.b16 %v264
      %v404 = vunpack.c.l.b16 %v265
      %v405 = vunpack.c.l.b16 %v266
      %v406 = vunpack.c.l.b16 %v267
      %v407 = vunpack.c.l.b16 %v268
      %v408 = vunpack.c.l.b16 %v269
      %v409 = vunpack.c.l.b16 %v270
      %v410 = vunpack.c.l.b16 %v271
      %v411 = vunpack.c.l.b16 %v272
      %v412 = vunpack.c.l.b16 %v273
      %v413 = vunpack.c.l.b16 %v274
      %v414 = vunpack.c.l.b16 %v275
      %v415 = vunpack.c.l.b16 %v276
      %v416 = vunpack.c.l.b16 %v277
      %v417 = vunpack.c.l.b16 %v278
      %v418 = vunpack.c.l.b16 %v279
      %v419 = vunpack.c.l.b16 %v280
      %v420 = vunpack.c.l.b16 %v281
      %v421 = vunpack.c.l.b16 %v282
      %v422 = vunpack.c.l.b16 %v283
      %v423 = vunpack.c.l.b16 %v284
      %v424 = vunpack.c.l.b16 %v285
      %v425 = vunpack.c.l.b16 %v286
      %v426 = vunpack.c.l.b16 %v287
      %v427 = vunpack.c.l.b16 %v288
      %v428 = vunpack.c.l.b16 %v289
      %v429 = vpack.c.b16 %v366, %v365
      %v430 = vpack.c.b16 %v368, %v367
      %v431 = vpack.c.b16 %v370, %v369
      %v432 = vpack.c.b16 %v372, %v371
      %v433 = vpack.c.b16 %v374, %v373
      %v434 = vpack.c.b16 %v376, %v375
      %v435 = vpack.c.b16 %v378, %v377
      %v436 = vpack.c.b16 %v380, %v379
      %v437 = vpack.c.b16 %v382, %v381
      %v438 = vpack.c.b16 %v384, %v383
      %v439 = vpack.c.b16 %v386, %v385
      %v440 = vpack.c.b16 %v388, %v387
      %v441 = vpack.c.b16 %v390, %v389
      %v442 = vpack.c.b16 %v392, %v391
      %v443 = vpack.c.b16 %v394, %v393
      %v444 = vpack.c.b16 %v396, %v395
      %v445 = vpack.c.b16 %v398, %v397
      %v446 = vpack.c.b16 %v400, %v399
      %v447 = vpack.c.b16 %v402, %v401
      %v448 = vpack.c.b16 %v404, %v403
      %v449 = vpack.c.b16 %v406, %v405
      %v450 = vpack.c.b16 %v408, %v407
      %v451 = vpack.c.b16 %v410, %v409
      %v452 = vpack.c.b16 %v412, %v411
      %v453 = vpack.c.b16 %v414, %v413
      %v454 = vpack.c.b16 %v416, %v415
      %v455 = vpack.c.b16 %v418, %v417
      %v456 = vpack.c.b16 %v420, %v419
      %v457 = vpack.c.b16 %v422, %v421
      %v458 = vpack.c.b16 %v424, %v423
      %v459 = vpack.c.b16 %v426, %v425
      %v460 = vpack.c.b16 %v428, %v427
      %v468 = vunpack.c.l.b16 %v290
      %v469 = vunpack.c.l.b16 %v291
      %v470 = vunpack.c.l.b16 %v292
      %v471 = vunpack.c.l.b16 %v293
      %v472 = vunpack.c.l.b16 %v294
      %v473 = vunpack.c.l.b16 %v295
      %v474 = vunpack.c.l.b16 %v296
      %v475 = vpack.c.b16 %v469, %v468
      %v476 = vpack.c.b16 %v471, %v470
      %v477 = vpack.c.b16 %v473, %v472
      %v478 = vpack.c.b16 %v474, %v474
      %vm482 = vcmask 400384
      %v484 = vsel %vm482, %v429, 0
      %v487 = vsel %vm482, %v430, 0
      %v490 = vsel %vm482, %v431, 0
      %v493 = vsel %vm482, %v432, 0
      %v496 = vsel %vm482, %v433, 0
      %v499 = vsel %vm482, %v434, 0
      %v502 = vsel %vm482, %v435, 0
      %v505 = vsel %vm482, %v436, 0
      %v508 = vsel %vm482, %v437, 0
      %v511 = vsel %vm482, %v438, 0
      %v514 = vsel %vm482, %v439, 0
      %v517 = vsel %vm482, %v440, 0
      %v520 = vsel %vm482, %v441, 0
      %v523 = vsel %vm482, %v442, 0
      %v526 = vsel %vm482, %v443, 0
      %v529 = vsel %vm482, %v444, 0
      %v532 = vsel %vm482, %v445, 0
      %v535 = vsel %vm482, %v446, 0
      %v538 = vsel %vm482, %v447, 0
      %v541 = vsel %vm482, %v448, 0
      %v544 = vsel %vm482, %v449, 0
      %v547 = vsel %vm482, %v450, 0
      %v550 = vsel %vm482, %v451, 0
      %v553 = vsel %vm482, %v452, 0
      %v556 = vsel %vm482, %v453, 0
      %v559 = vsel %vm482, %v454, 0
      %v562 = vsel %vm482, %v455, 0
      %v565 = vsel %vm482, %v456, 0
      %v568 = vsel %vm482, %v457, 0
      %v571 = vsel %vm482, %v458, 0
      %v574 = vsel %vm482, %v459, 0
      %v577 = vsel %vm482, %v460, 0
      %vm579 = vcmask 1040384
      %v580 = vsel 0, 4294967295, 65535
      %v581 = vsel %vm579, %v580, 0
      %v583 = vand.u32 %v478, %v581
      %585 = vmatpush.bf16.msra.mxu0 0
      %586 = vmatpush.bf16.msra.mxu0 0
      %587 = vmatpush.bf16.msra.mxu0 0
      %588 = vmatpush.bf16.msra.mxu0 0
      %589 = vmatpush.bf16.msra.mxu0 %v583
      %590 = vmatpush.bf16.msra.mxu0 %v477
      %591 = vmatpush.bf16.msra.mxu0 %v476
      %592 = vmatpush.bf16.msra.mxu0 %v475
      %593 = vmatmul.bf16.gmra.mxu0 %v484
      %v594 = vpop.f32.mrf.mxu0
      %v595 = vadd.f32 %v299, %v594
      %v596 = vpop.f32.mrf.mxu0
      %v597 = vadd.f32 %v299, %v596
      %598 = vmatmul.bf16.gmra.mxu0 %v487
      %v599 = vpop.f32.mrf.mxu0
      %v600 = vadd.f32 %v299, %v599
      %v601 = vpop.f32.mrf.mxu0
      %v602 = vadd.f32 %v299, %v601
      %603 = vmatmul.bf16.gmra.mxu0 %v490
      %v604 = vpop.f32.mrf.mxu0
      %v605 = vadd.f32 %v299, %v604
      %v606 = vpop.f32.mrf.mxu0
      %v607 = vadd.f32 %v299, %v606
      %608 = vmatmul.bf16.gmra.mxu0 %v493
      %v609 = vpop.f32.mrf.mxu0
      %v610 = vadd.f32 %v299, %v609
      %v611 = vpop.f32.mrf.mxu0
      %v612 = vadd.f32 %v299, %v611
      %613 = vmatmul.bf16.gmra.mxu0 %v496
      %v614 = vpop.f32.mrf.mxu0
      %v615 = vadd.f32 %v299, %v614
      %v616 = vpop.f32.mrf.mxu0
      %v617 = vadd.f32 %v299, %v616
      %618 = vmatmul.bf16.gmra.mxu0 %v499
      %v619 = vpop.f32.mrf.mxu0
      %v620 = vadd.f32 %v299, %v619
      %v621 = vpop.f32.mrf.mxu0
      %v622 = vadd.f32 %v299, %v621
      %623 = vmatmul.bf16.gmra.mxu0 %v502
      %v624 = vpop.f32.mrf.mxu0
      %v625 = vadd.f32 %v299, %v624
      %v626 = vpop.f32.mrf.mxu0
      %v627 = vadd.f32 %v299, %v626
      %628 = vmatmul.bf16.gmra.mxu0 %v505
      %v629 = vpop.f32.mrf.mxu0
      %v630 = vadd.f32 %v299, %v629
      %v631 = vpop.f32.mrf.mxu0
      %v632 = vadd.f32 %v299, %v631
      %633 = vmatmul.bf16.gmra.mxu0 %v508
      %v634 = vpop.f32.mrf.mxu0
      %v635 = vadd.f32 %v299, %v634
      %v636 = vpop.f32.mrf.mxu0
      %v637 = vadd.f32 %v299, %v636
      %638 = vmatmul.bf16.gmra.mxu0 %v511
      %v639 = vpop.f32.mrf.mxu0
      %v640 = vadd.f32 %v299, %v639
      %v641 = vpop.f32.mrf.mxu0
      %v642 = vadd.f32 %v299, %v641
      %643 = vmatmul.bf16.gmra.mxu0 %v514
      %v644 = vpop.f32.mrf.mxu0
      %v645 = vadd.f32 %v299, %v644
      %v646 = vpop.f32.mrf.mxu0
      %v647 = vadd.f32 %v299, %v646
      %648 = vmatmul.bf16.gmra.mxu0 %v517
      %v649 = vpop.f32.mrf.mxu0
      %v650 = vadd.f32 %v299, %v649
      %v651 = vpop.f32.mrf.mxu0
      %v652 = vadd.f32 %v299, %v651
      %653 = vmatmul.bf16.gmra.mxu0 %v520
      %v654 = vpop.f32.mrf.mxu0
      %v655 = vadd.f32 %v299, %v654
      %v656 = vpop.f32.mrf.mxu0
      %v657 = vadd.f32 %v299, %v656
      %658 = vmatmul.bf16.gmra.mxu0 %v523
      %v659 = vpop.f32.mrf.mxu0
      %v660 = vadd.f32 %v299, %v659
      %v661 = vpop.f32.mrf.mxu0
      %v662 = vadd.f32 %v299, %v661
      %663 = vmatmul.bf16.gmra.mxu0 %v526
      %v664 = vpop.f32.mrf.mxu0
      %v665 = vadd.f32 %v299, %v664
      %v666 = vpop.f32.mrf.mxu0
      %v667 = vadd.f32 %v299, %v666
      %668 = vmatmul.bf16.gmra.mxu0 %v529
      %v669 = vpop.f32.mrf.mxu0
      %v670 = vadd.f32 %v299, %v669
      %v671 = vpop.f32.mrf.mxu0
      %v672 = vadd.f32 %v299, %v671
      %673 = vmatmul.bf16.gmra.mxu0 %v532
      %v674 = vpop.f32.mrf.mxu0
      %v675 = vadd.f32 %v299, %v674
      %v676 = vpop.f32.mrf.mxu0
      %v677 = vadd.f32 %v299, %v676
      %678 = vmatmul.bf16.gmra.mxu0 %v535
      %v679 = vpop.f32.mrf.mxu0
      %v680 = vadd.f32 %v299, %v679
      %v681 = vpop.f32.mrf.mxu0
      %v682 = vadd.f32 %v299, %v681
      %683 = vmatmul.bf16.gmra.mxu0 %v538
      %v684 = vpop.f32.mrf.mxu0
      %v685 = vadd.f32 %v299, %v684
      %v686 = vpop.f32.mrf.mxu0
      %v687 = vadd.f32 %v299, %v686
      %688 = vmatmul.bf16.gmra.mxu0 %v541
      %v689 = vpop.f32.mrf.mxu0
      %v690 = vadd.f32 %v299, %v689
      %v691 = vpop.f32.mrf.mxu0
      %v692 = vadd.f32 %v299, %v691
      %693 = vmatmul.bf16.gmra.mxu0 %v544
      %v694 = vpop.f32.mrf.mxu0
      %v695 = vadd.f32 %v299, %v694
      %v696 = vpop.f32.mrf.mxu0
      %v697 = vadd.f32 %v299, %v696
      %698 = vmatmul.bf16.gmra.mxu0 %v547
      %v699 = vpop.f32.mrf.mxu0
      %v700 = vadd.f32 %v299, %v699
      %v701 = vpop.f32.mrf.mxu0
      %v702 = vadd.f32 %v299, %v701
      %703 = vmatmul.bf16.gmra.mxu0 %v550
      %v704 = vpop.f32.mrf.mxu0
      %v705 = vadd.f32 %v299, %v704
      %v706 = vpop.f32.mrf.mxu0
      %v707 = vadd.f32 %v299, %v706
      %708 = vmatmul.bf16.gmra.mxu0 %v553
      %v709 = vpop.f32.mrf.mxu0
      %v710 = vadd.f32 %v299, %v709
      %v711 = vpop.f32.mrf.mxu0
      %v712 = vadd.f32 %v299, %v711
      %713 = vmatmul.bf16.gmra.mxu0 %v556
      %v714 = vpop.f32.mrf.mxu0
      %v715 = vadd.f32 %v299, %v714
      %v716 = vpop.f32.mrf.mxu0
      %v717 = vadd.f32 %v299, %v716
      %718 = vmatmul.bf16.gmra.mxu0 %v559
      %v719 = vpop.f32.mrf.mxu0
      %v720 = vadd.f32 %v299, %v719
      %v721 = vpop.f32.mrf.mxu0
      %v722 = vadd.f32 %v299, %v721
      %723 = vmatmul.bf16.gmra.mxu0 %v562
      %v724 = vpop.f32.mrf.mxu0
      %v725 = vadd.f32 %v299, %v724
      %v726 = vpop.f32.mrf.mxu0
      %v727 = vadd.f32 %v299, %v726
      %728 = vmatmul.bf16.gmra.mxu0 %v565
      %v729 = vpop.f32.mrf.mxu0
      %v730 = vadd.f32 %v299, %v729
      %v731 = vpop.f32.mrf.mxu0
      %v732 = vadd.f32 %v299, %v731
      %733 = vmatmul.bf16.gmra.mxu0 %v568
      %v734 = vpop.f32.mrf.mxu0
      %v735 = vadd.f32 %v299, %v734
      %v736 = vpop.f32.mrf.mxu0
      %v737 = vadd.f32 %v299, %v736
      %738 = vmatmul.bf16.gmra.mxu0 %v571
      %v739 = vpop.f32.mrf.mxu0
      %v740 = vadd.f32 %v299, %v739
      %v741 = vpop.f32.mrf.mxu0
      %v742 = vadd.f32 %v299, %v741
      %743 = vmatmul.bf16.gmra.mxu0 %v574
      %v744 = vpop.f32.mrf.mxu0
      %v745 = vadd.f32 %v299, %v744
      %v746 = vpop.f32.mrf.mxu0
      %v747 = vadd.f32 %v299, %v746
      %748 = vmatmul.bf16.gmra.mxu0 %v577
      %v749 = vpop.f32.mrf.mxu0
      %v750 = vadd.f32 %v299, %v749
      %v751 = vpop.f32.mrf.mxu0
      %v752 = vadd.f32 %v299, %v751
      %753 = vdwg.mxu0
      %v754 = vpack.c.bf16 %v595, %v595
      %v755 = vpack.c.bf16 %v597, %v597
      %v756 = vpack.c.bf16 %v600, %v600
      %v757 = vpack.c.bf16 %v602, %v602
      %v758 = vpack.c.bf16 %v605, %v605
      %v759 = vpack.c.bf16 %v607, %v607
      %v760 = vpack.c.bf16 %v610, %v610
      %v761 = vpack.c.bf16 %v612, %v612
      %v762 = vpack.c.bf16 %v615, %v615
      %v763 = vpack.c.bf16 %v617, %v617
      %v764 = vpack.c.bf16 %v620, %v620
      %v765 = vpack.c.bf16 %v622, %v622
      %v766 = vpack.c.bf16 %v625, %v625
      %v767 = vpack.c.bf16 %v627, %v627
      %v768 = vpack.c.bf16 %v630, %v630
      %v769 = vpack.c.bf16 %v632, %v632
      %v770 = vpack.c.bf16 %v635, %v635
      %v771 = vpack.c.bf16 %v637, %v637
      %v772 = vpack.c.bf16 %v640, %v640
      %v773 = vpack.c.bf16 %v642, %v642
      %v774 = vpack.c.bf16 %v645, %v645
      %v775 = vpack.c.bf16 %v647, %v647
      %v776 = vpack.c.bf16 %v650, %v650
      %v777 = vpack.c.bf16 %v652, %v652
      %v778 = vpack.c.bf16 %v655, %v655
      %v779 = vpack.c.bf16 %v657, %v657
      %v780 = vpack.c.bf16 %v660, %v660
      %v781 = vpack.c.bf16 %v662, %v662
      %v782 = vpack.c.bf16 %v665, %v665
      %v783 = vpack.c.bf16 %v667, %v667
      %v784 = vpack.c.bf16 %v670, %v670
      %v785 = vpack.c.bf16 %v672, %v672
      %v786 = vpack.c.bf16 %v675, %v675
      %v787 = vpack.c.bf16 %v677, %v677
      %v788 = vpack.c.bf16 %v680, %v680
      %v789 = vpack.c.bf16 %v682, %v682
      %v790 = vpack.c.bf16 %v685, %v685
      %v791 = vpack.c.bf16 %v687, %v687
      %v792 = vpack.c.bf16 %v690, %v690
      %v793 = vpack.c.bf16 %v692, %v692
      %v794 = vpack.c.bf16 %v695, %v695
      %v795 = vpack.c.bf16 %v697, %v697
      %v796 = vpack.c.bf16 %v700, %v700
      %v797 = vpack.c.bf16 %v702, %v702
      %v798 = vpack.c.bf16 %v705, %v705
      %v799 = vpack.c.bf16 %v707, %v707
      %v800 = vpack.c.bf16 %v710, %v710
      %v801 = vpack.c.bf16 %v712, %v712
      %v802 = vpack.c.bf16 %v715, %v715
      %v803 = vpack.c.bf16 %v717, %v717
      %v804 = vpack.c.bf16 %v720, %v720
      %v805 = vpack.c.bf16 %v722, %v722
      %v806 = vpack.c.bf16 %v725, %v725
      %v807 = vpack.c.bf16 %v727, %v727
      %v808 = vpack.c.bf16 %v730, %v730
      %v809 = vpack.c.bf16 %v732, %v732
      %v810 = vpack.c.bf16 %v735, %v735
      %v811 = vpack.c.bf16 %v737, %v737
      %v812 = vpack.c.bf16 %v740, %v740
      %v813 = vpack.c.bf16 %v742, %v742
      %v814 = vpack.c.bf16 %v745, %v745
      %v815 = vpack.c.bf16 %v747, %v747
      %v816 = vpack.c.bf16 %v750, %v750
      %v817 = vpack.c.bf16 %v752, %v752
      %vm818 = vcmask 125952
      %819 = vst.msk [vmem:[%s223] sm:$0xf] %vm818, %v754
      %820 = vst.msk [vmem:[%s223 + $0x4] sm:$0xf] %vm818, %v755
      %821 = vst.msk [vmem:[%s223 + $0x8] sm:$0xf] %vm818, %v756
      %822 = vst.msk [vmem:[%s223 + $0xc] sm:$0xf] %vm818, %v757
      %823 = vst.msk [vmem:[%s223 + $0x10] sm:$0xf] %vm818, %v758
      %824 = vst.msk [vmem:[%s223 + $0x14] sm:$0xf] %vm818, %v759
      %825 = vst.msk [vmem:[%s223 + $0x18] sm:$0xf] %vm818, %v760
      %826 = vst.msk [vmem:[%s223 + $0x1c] sm:$0xf] %vm818, %v761
      %827 = vst.msk [vmem:[%s223 + $0x20] sm:$0xf] %vm818, %v762
      %828 = vst.msk [vmem:[%s223 + $0x24] sm:$0xf] %vm818, %v763
      %829 = vst.msk [vmem:[%s223 + $0x28] sm:$0xf] %vm818, %v764
      %830 = vst.msk [vmem:[%s223 + $0x2c] sm:$0xf] %vm818, %v765
      %831 = vst.msk [vmem:[%s223 + $0x30] sm:$0xf] %vm818, %v766
      %832 = vst.msk [vmem:[%s223 + $0x34] sm:$0xf] %vm818, %v767
      %833 = vst.msk [vmem:[%s223 + $0x38] sm:$0xf] %vm818, %v768
      %834 = vst.msk [vmem:[%s223 + $0x3c] sm:$0xf] %vm818, %v769
      %835 = vst.msk [vmem:[%s223 + $0x40] sm:$0xf] %vm818, %v770
      %836 = vst.msk [vmem:[%s223 + $0x44] sm:$0xf] %vm818, %v771
      %837 = vst.msk [vmem:[%s223 + $0x48] sm:$0xf] %vm818, %v772
      %838 = vst.msk [vmem:[%s223 + $0x4c] sm:$0xf] %vm818, %v773
      %839 = vst.msk [vmem:[%s223 + $0x50] sm:$0xf] %vm818, %v774
      %840 = vst.msk [vmem:[%s223 + $0x54] sm:$0xf] %vm818, %v775
      %841 = vst.msk [vmem:[%s223 + $0x58] sm:$0xf] %vm818, %v776
      %842 = vst.msk [vmem:[%s223 + $0x5c] sm:$0xf] %vm818, %v777
      %843 = vst.msk [vmem:[%s223 + $0x60] sm:$0xf] %vm818, %v778
      %844 = vst.msk [vmem:[%s223 + $0x64] sm:$0xf] %vm818, %v779
      %845 = vst.msk [vmem:[%s223 + $0x68] sm:$0xf] %vm818, %v780
      %846 = vst.msk [vmem:[%s223 + $0x6c] sm:$0xf] %vm818, %v781
      %847 = vst.msk [vmem:[%s223 + $0x70] sm:$0xf] %vm818, %v782
      %848 = vst.msk [vmem:[%s223 + $0x74] sm:$0xf] %vm818, %v783
      %849 = vst.msk [vmem:[%s223 + $0x78] sm:$0xf] %vm818, %v784
      %850 = vst.msk [vmem:[%s223 + $0x7c] sm:$0xf] %vm818, %v785
      %851 = vst.msk [vmem:[%s223 + $0x80] sm:$0xf] %vm818, %v786
      %852 = vst.msk [vmem:[%s223 + $0x84] sm:$0xf] %vm818, %v787
      %853 = vst.msk [vmem:[%s223 + $0x88] sm:$0xf] %vm818, %v788
      %854 = vst.msk [vmem:[%s223 + $0x8c] sm:$0xf] %vm818, %v789
      %855 = vst.msk [vmem:[%s223 + $0x90] sm:$0xf] %vm818, %v790
      %856 = vst.msk [vmem:[%s223 + $0x94] sm:$0xf] %vm818, %v791
      %857 = vst.msk [vmem:[%s223 + $0x98] sm:$0xf] %vm818, %v792
      %858 = vst.msk [vmem:[%s223 + $0x9c] sm:$0xf] %vm818, %v793
      %859 = vst.msk [vmem:[%s223 + $0xa0] sm:$0xf] %vm818, %v794
      %860 = vst.msk [vmem:[%s223 + $0xa4] sm:$0xf] %vm818, %v795
      %861 = vst.msk [vmem:[%s223 + $0xa8] sm:$0xf] %vm818, %v796
      %862 = vst.msk [vmem:[%s223 + $0xac] sm:$0xf] %vm818, %v797
      %863 = vst.msk [vmem:[%s223 + $0xb0] sm:$0xf] %vm818, %v798
      %864 = vst.msk [vmem:[%s223 + $0xb4] sm:$0xf] %vm818, %v799
      %865 = vst.msk [vmem:[%s223 + $0xb8] sm:$0xf] %vm818, %v800
      %866 = vst.msk [vmem:[%s223 + $0xbc] sm:$0xf] %vm818, %v801
      %867 = vst.msk [vmem:[%s223 + $0xc0] sm:$0xf] %vm818, %v802
      %868 = vst.msk [vmem:[%s223 + $0xc4] sm:$0xf] %vm818, %v803
      %869 = vst.msk [vmem:[%s223 + $0xc8] sm:$0xf] %vm818, %v804
      %870 = vst.msk [vmem:[%s223 + $0xcc] sm:$0xf] %vm818, %v805
      %871 = vst.msk [vmem:[%s223 + $0xd0] sm:$0xf] %vm818, %v806
      %872 = vst.msk [vmem:[%s223 + $0xd4] sm:$0xf] %vm818, %v807
      %873 = vst.msk [vmem:[%s223 + $0xd8] sm:$0xf] %vm818, %v808
      %874 = vst.msk [vmem:[%s223 + $0xdc] sm:$0xf] %vm818, %v809
      %875 = vst.msk [vmem:[%s223 + $0xe0] sm:$0xf] %vm818, %v810
      %876 = vst.msk [vmem:[%s223 + $0xe4] sm:$0xf] %vm818, %v811
      %877 = vst.msk [vmem:[%s223 + $0xe8] sm:$0xf] %vm818, %v812
      %878 = vst.msk [vmem:[%s223 + $0xec] sm:$0xf] %vm818, %v813
      %879 = vst.msk [vmem:[%s223 + $0xf0] sm:$0xf] %vm818, %v814
      %880 = vst.msk [vmem:[%s223 + $0xf4] sm:$0xf] %vm818, %v815
      %881 = vst.msk [vmem:[%s223 + $0xf8] sm:$0xf] %vm818, %v816
      %882 = vst.msk [vmem:[%s223 + $0xfc] sm:$0xf] %vm818, %v817
      %s883 = smul.u32 64, %s18
      %p884 = scmp.lt.s32.totalorder %s883, 255
      %s885 = scalar_select %p884, %s883, 255
      %p886 = scmp.lt.s32.totalorder %s19, 0
      %s887 = scalar_select %p886, %s19, 0
      %s888 = sadd.s32 %s887, %s885
      %s889 = smul.addr %s888, 4
      %s890 = scalar_lea.vmem %s3, %s889
      // Predicated region
      $region33: #{pallas_matmul.1} parent=31 // pred_check
        %p891 = pneg %p124
      $region34: #{pallas_matmul.1} parent=31 // pred_check_branch
        %893 = sbr.rel (%p891) target = $region36
      $region35: #{pallas_matmul.1} parent=31 // pred_region
        %s894 = smul.u32 64, %s18
      $region36: #{pallas_matmul.1} parent=31 // pred_fallthru
        _
    $region32: #{pallas_matmul.1} parent=5 // pred_fallthru
      _
    %p895 = scmp.le.s32.totalorder 2, %s9
    // Predicated region
    $region37: #{pallas_matmul.1} parent=5 // pred_check
      %p896 = pneg %p895
    $region38: #{pallas_matmul.1} parent=5 // pred_check_branch
      %898 = sbr.rel (%p896) target = $region40
    $region39: #{pallas_matmul.1} parent=5 // pred_region
      %s899 = ssub.s32 %s9, 2
      // Predicated region
      $region41: #{pallas_matmul.1} parent=39 // pred_check
        %p900 = pneg %p130
      $region42: #{pallas_matmul.1} parent=39 // pred_check_branch
        %902 = sbr.rel (%p900) target = $region44
      $region43: #{pallas_matmul.1} parent=39 // pred_region
        %s903 = smul.u32 64, %s20
        %p904 = scmp.lt.s32.totalorder %s903, 255
        %s905 = scalar_select %p904, %s903, 255
        %p906 = scmp.lt.s32.totalorder %s21, 0
        %s907 = scalar_select %p906, %s21, 0
        %s908 = sadd.s32 %s907, %s905
        %s909 = smul.addr %s908, 4
        %s910 = scalar_lea.vmem %s3, %s909
      $region44: #{pallas_matmul.1} parent=39 // pred_fallthru
        _
    $region40: #{pallas_matmul.1} parent=5 // pred_fallthru
      _
  $region6: #{pallas_matmul.1} parent=0 // loop_footer
    %s13 = sadd.s32 1, %s9
  $region7: #{pallas_matmul.1} parent=0 // loop_footer_branch
    %8 = sbr.rel target = $region3
  $region8: #{pallas_matmul.1} parent=0 // loop_exit
    _

</llo_original>
